<compile_context>
chip_gen: v7x
topology: tpu7x:2x2x1
jax: 0.10.0
libtpu: 0.0.40
codegen_flags: <defaults>
</compile_context>

<pallas_src>
import functools

import numpy as np

import jax
import jax.numpy as jnp
from jax.experimental import pallas as pl
from jax.experimental.pallas import tpu as pltpu


def _round_up(x, m):
    return (x + m - 1) // m * m


def fused_conv_block_kernel(x_ref, b1_ref, bias1_ref, b2_ref, bias2_ref, o_ref,
                            xpad1, xpad2, *, H, W, cin, cmid, cout, bt, S):
    """Fused (conv3x3 + folded-BN + ReLU) x 2 for a tile of `bt` images.

    x_ref:     (bt, H, W*cin)         bf16  input block, channels fastest in the lane dim
    b1_ref:    (3, W*cin,  W*cmid)    bf16  per-ky width-banded weights (BN scale + width pad folded),
                                            whole array resident in VMEM (single copy)
    bias1_ref: (1, W*cmid)            f32   folded conv+BN bias, tiled across width
    b2_ref:    (3, W*cmid, W*cout)    bf16
    bias2_ref: (1, W*cout)            f32
    o_ref:     (bt, H, W*cout)        out   lane-dense output block
    xpad1:     VMEM (bt*S, W*cin)     bf16  per-image slabs: [halo | H data rows | halo+separator]
    xpad2:     VMEM (bt*S, W*cmid)    bf16  layer-2 input slabs (activation never leaves VMEM)

    Each image b lives in rows [b*S, (b+1)*S): row b*S is the top halo, rows b*S+1 .. b*S+H are
    data, rows b*S+H+1 .. (b+1)*S-1 are the bottom halo + zero separator.  A single contiguous
    ky-shifted matmul over M = (bt-1)*S + H rows then yields image b's output row h at index
    b*S + h; rows that would cross a slab boundary are junk and are simply never copied out.
    """
    M = (bt - 1) * S + H  # rows of the shared accumulator that carry real outputs

    # ---- stage layer-1 input (bf16, no cast); zero only halo/separator rows, not data rows ----
    for b in range(bt):
        r0 = b * S
        xpad1[r0:r0 + 1, :] = jnp.zeros((1, W * cin), xpad1.dtype)                   # top halo
        xpad1[r0 + 1:r0 + 1 + H, :] = x_ref[b]                                       # data rows
        xpad1[r0 + 1 + H:r0 + S, :] = jnp.zeros((S - H - 1, W * cin), xpad1.dtype)   # bottom halo + sep

    # ---- layer 1: 3 deep matmuls, K = W*cin, output lanes = W*cmid, f32 accumulation ----
    acc = jnp.zeros((M, W * cmid), jnp.float32)
    for ky in range(3):
        acc = acc + jnp.dot(xpad1[ky:ky + M, :], b1_ref[ky],
                            preferred_element_type=jnp.float32)
    # folded BN bias + ReLU (f32 epilogue), then a single bf16 cast for the layer-2 operand
    y1 = jnp.maximum(acc + bias1_ref[...], 0.0).astype(jnp.bfloat16)

    # ---- stage layer-2 input in VMEM (intermediate activation never touches HBM) ----
    for b in range(bt):
        r0 = b * S
        xpad2[r0:r0 + 1, :] = jnp.zeros((1, W * cmid), xpad2.dtype)
        xpad2[r0 + 1:r0 + 1 + H, :] = y1[r0:r0 + H, :]                               # data rows only
        xpad2[r0 + 1 + H:r0 + S, :] = jnp.zeros((S - H - 1, W * cmid), xpad2.dtype)

    # ---- layer 2: 3 deep matmuls, K = W*cmid, output lanes = W*cout ----
    acc2 = jnp.zeros((M, W * cout), jnp.float32)
    for ky in range(3):
        acc2 = acc2 + jnp.dot(xpad2[ky:ky + M, :], b2_ref[ky],
                              preferred_element_type=jnp.float32)
    y2 = jnp.maximum(acc2 + bias2_ref[...], 0.0).astype(o_ref.dtype)

    # ---- lane-dense writeback, one slab at a time (no reshape) ----
    for b in range(bt):
        o_ref[b] = y2[b * S:b * S + H, :]


def build_banded_weights(w_folded_bf16, W):
    """Pack HWIO 3x3 weights into per-ky (W*Cin, W*Cout) banded matrices.

    B[ky][(w_out+kx-1)*Cin + ci, w_out*Cout + co] = w[ky, kx, ci, co]; width out-of-range taps
    are simply absent (zero band), which implements the width zero-padding for free.
    """
    wf = np.asarray(w_folded_bf16.astype(jnp.float32))   # exact bf16 values
    _, _, cin, cout = wf.shape
    B = np.zeros((3, W * cin, W * cout), np.float32)
    for ky in range(3):
        for wo in range(W):
            for kx in range(3):
                wi = wo + kx - 1
                if 0 <= wi < W:
                    B[ky, wi * cin:(wi + 1) * cin, wo * cout:(wo + 1) * cout] = wf[ky, kx]
    return jnp.asarray(B, dtype=jnp.bfloat16)


def make_layer_params(key, cin, cout, W, eps=1e-5):
    """Deterministic synthetic params for one Conv2d + BatchNorm2d(eval) layer, pre-folded."""
    k = jax.random.split(key, 6)
    w = jax.random.normal(k[0], (3, 3, cin, cout), jnp.float32) * 0.1   # HWIO
    conv_b = jax.random.normal(k[1], (cout,), jnp.float32) * 0.1
    gamma = 1.0 + 0.1 * jax.random.normal(k[2], (cout,), jnp.float32)
    beta = 0.1 * jax.random.normal(k[3], (cout,), jnp.float32)
    run_mean = 0.1 * jax.random.normal(k[4], (cout,), jnp.float32)
    run_var = jnp.abs(jax.random.normal(k[5], (cout,), jnp.float32)) + 0.5

    # BN(eval) fold: y = scale * (conv(x) + conv_b - mean) + beta
    scale = gamma / jnp.sqrt(run_var + eps)
    bias = (conv_b - run_mean) * scale + beta                 # f32, applied post-matmul
    w_folded_bf16 = (w * scale[None, None, None, :]).astype(jnp.bfloat16)  # scale into weights

    banded = build_banded_weights(w_folded_bf16, W)
    bias_flat = jnp.tile(bias, (W,)).reshape(1, W * cout).astype(jnp.float32)

    return dict(cout=cout, w_folded_bf16=w_folded_bf16, bias=bias,
                banded=banded, bias_flat=bias_flat)


def unet_conv_block(x_nchw, p1, p2, *, batch_tile=None, out_dtype=jnp.float32):
    """Forward matching UNetConvBlock(num_convs=2, is_batchnorm=True). NCHW in / NCHW out."""
    N, cin, H, W = x_nchw.shape
    cmid = p1["cout"]
    cout = p2["cout"]

    # Per-image slab height inside the staging buffer: 1-row halos + pad to 8-sublane alignment.
    S = _round_up(H + 2, 8)

    if batch_tile is None:
        # Fill the MXU M dimension (~128 rows per step), but keep >= 2 parallel grid steps when
        # the batch allows so both v7x TensorCores get work.
        cap = max(1, 128 // S)
        cap = min(cap, max(1, N // 2))
        batch_tile = max(d for d in range(1, cap + 1) if N % d == 0)
    assert N % batch_tile == 0, "batch_tile must divide the batch size"
    bt = batch_tile
    steps = N // bt

    # NCHW -> NHWC -> (N, H, W*C), bf16 operands for the MXU (layout glue only).
    x_flat = jnp.transpose(x_nchw, (0, 2, 3, 1)).reshape(N, H, W * cin).astype(jnp.bfloat16)

    M = (bt - 1) * S + H
    out_itemsize = jnp.dtype(out_dtype).itemsize

    # Actual MXU work of the banded matmuls (not the smaller "true conv" FLOPs) + HBM traffic.
    flops = 2 * steps * M * 3 * ((W * cin) * (W * cmid) + (W * cmid) * (W * cout))
    bytes_accessed = int(x_flat.size * 2 + N * H * W * cout * out_itemsize
                         + (p1["banded"].size + p2["banded"].size) * 2
                         + (p1["bias_flat"].size + p2["bias_flat"].size) * 4)

    # VMEM budget: double-buffered activation in/out blocks + single-copy weights/biases + scratch.
    vmem_budget = (2 * bt * H * W * cin * 2
                   + 2 * bt * H * W * cout * out_itemsize
                   + (p1["banded"].size + p2["banded"].size) * 2
                   + (p1["bias_flat"].size + p2["bias_flat"].size) * 4
                   + bt * S * (W * cin + W * cmid) * 2)
    # 2x headroom for tile padding / compiler internal scratch; never request all of physical VMEM.
    vmem_limit = int(min(max(2 * vmem_budget, 4 * 1024 * 1024), 100 * 1024 * 1024))

    kernel = functools.partial(fused_conv_block_kernel,
                               H=H, W=W, cin=cin, cmid=cmid, cout=cout, bt=bt, S=S)

    # Constant-across-the-grid operands: whole array resident in VMEM, single copy (no
    # per-step pipelining / double-buffering).
    const_vmem = pl.BlockSpec(memory_space=pltpu.MemorySpace.VMEM)

    out_flat = pl.pallas_call(
        kernel,
        out_shape=jax.ShapeDtypeStruct((N, H, W * cout), out_dtype),
        grid_spec=pltpu.PrefetchScalarGridSpec(
            num_scalar_prefetch=0,
            grid=(steps,),
            in_specs=[
                pl.BlockSpec((bt, H, W * cin), lambda i: (i, 0, 0)),
                const_vmem,   # banded weights, layer 1
                const_vmem,   # folded bias,   layer 1
                const_vmem,   # banded weights, layer 2
                const_vmem,   # folded bias,   layer 2
            ],
            out_specs=pl.BlockSpec((bt, H, W * cout), lambda i: (i, 0, 0)),
            scratch_shapes=[
                pltpu.VMEM((bt * S, W * cin), jnp.bfloat16),
                pltpu.VMEM((bt * S, W * cmid), jnp.bfloat16),
            ],
        ),
        compiler_params=pltpu.CompilerParams(
            dimension_semantics=("parallel",),
            vmem_limit_bytes=vmem_limit,
        ),
        cost_estimate=pl.CostEstimate(
            flops=int(flops), transcendentals=0, bytes_accessed=bytes_accessed),
    )(x_flat, p1["banded"], p1["bias_flat"], p2["banded"], p2["bias_flat"])

    out = out_flat.reshape(N, H, W, cout)
    return jnp.transpose(out, (0, 3, 1, 2))


def reference_unet_conv_block(x_nchw, layers):
    """Pure-JAX/XLA reference with identical precision choices (bf16 operands, f32 accumulate)."""
    x = jnp.transpose(x_nchw, (0, 2, 3, 1))
    for p in layers:
        y = jax.lax.conv_general_dilated(
            x.astype(jnp.bfloat16), p["w_folded_bf16"],
            window_strides=(1, 1), padding=((1, 1), (1, 1)),
            dimension_numbers=("NHWC", "HWIO", "NHWC"),
            preferred_element_type=jnp.float32)
        x = jnp.maximum(y + p["bias"][None, None, None, :], 0.0)
    return jnp.transpose(x, (0, 3, 1, 2))


if __name__ == "__main__":
    key = jax.random.PRNGKey(0)
    kx, k1, k2 = jax.random.split(key, 3)

    N, Cin, H, W = 2, 4, 16, 16
    Cout = 8
    x = jax.random.normal(kx, (N, Cin, H, W), jnp.float32)

    # num_convs = 2: Cin->Cout then Cout->Cout, as in the PyTorch __init__.
    p1 = make_layer_params(k1, Cin, Cout, W)
    p2 = make_layer_params(k2, Cout, Cout, W)

    ref = reference_unet_conv_block(x, [p1, p2])

    # Default tiling: one image per grid step (grid=(2,)) so a 2-TC chip gets both steps.
    out = jax.block_until_ready(unet_conv_block(x, p1, p2))
    assert out.shape == (N, Cout, H, W), out.shape
    err = float(jnp.max(jnp.abs(out - ref)))
    assert jnp.allclose(out, ref, atol=5e-3, rtol=5e-3), err

    # Batched-rows path: both images stacked into the matmul M dimension in one grid step
    # (exercises the slab/separator staging used to fill the MXU at larger batch sizes).
    out_b = jax.block_until_ready(unet_conv_block(x, p1, p2, batch_tile=2))
    err_b = float(jnp.max(jnp.abs(out_b - ref)))
    assert jnp.allclose(out_b, ref, atol=5e-3, rtol=5e-3), err_b

    print("KERNEL_OK")
</pallas_src>

<mosaic_0001>
module attributes {stable_mosaic.version = 11 : i64} {
  func.func @fused_conv_block_kernel(%arg0: i32, %arg1: memref<1x16x64xbf16, #tpu.memory_space<vmem>>, %arg2: memref<3x64x128xbf16, #tpu.memory_space<vmem>>, %arg3: memref<1x128xf32, #tpu.memory_space<vmem>>, %arg4: memref<3x128x128xbf16, #tpu.memory_space<vmem>>, %arg5: memref<1x128xf32, #tpu.memory_space<vmem>>, %arg6: memref<1x16x128xf32, #tpu.memory_space<vmem>>, %arg7: memref<24x64xbf16, #tpu.memory_space<vmem>>, %arg8: memref<24x128xbf16, #tpu.memory_space<vmem>>) attributes {dimension_semantics = [#tpu.dimension_semantics<parallel>], iteration_bounds = array<i64: 2>, scalar_prefetch = 0 : i64, scratch_operands = 2 : i64, tpu.core_type = #tpu.core_type<tc>, window_params = [{transform_indices = @transform_0, window_bounds = array<i64: 1, 16, 64>}, {pipeline_mode = #tpu.pipeline_mode<synchronous>, transform_indices = @transform_1, window_bounds = array<i64: 3, 64, 128>}, {pipeline_mode = #tpu.pipeline_mode<synchronous>, transform_indices = @transform_2, window_bounds = array<i64: 1, 128>}, {pipeline_mode = #tpu.pipeline_mode<synchronous>, transform_indices = @transform_3, window_bounds = array<i64: 3, 128, 128>}, {pipeline_mode = #tpu.pipeline_mode<synchronous>, transform_indices = @transform_4, window_bounds = array<i64: 1, 128>}, {transform_indices = @transform_5, window_bounds = array<i64: 1, 16, 128>}]} {
    %cst = arith.constant 0.000000e+00 : bf16
    %0 = vector.broadcast %cst : bf16 to vector<1x64xbf16>
    %c0 = arith.constant 0 : index
    %c0_0 = arith.constant 0 : index
    %1 = vector.load %arg7[%c0, %c0_0] : memref<24x64xbf16, #tpu.memory_space<vmem>>, vector<1x64xbf16>
    tpu.vector_store %arg7[%c0, %c0_0], %0 {strides = array<i32>} : memref<24x64xbf16, #tpu.memory_space<vmem>>, vector<1x64xbf16>,
    %c0_1 = arith.constant 0 : index
    %c0_2 = arith.constant 0 : index
    %c0_3 = arith.constant 0 : index
    %2 = vector.load %arg1[%c0_1, %c0_2, %c0_3] : memref<1x16x64xbf16, #tpu.memory_space<vmem>>, vector<1x16x64xbf16>
    %3 = vector.shape_cast %2 : vector<1x16x64xbf16> to vector<16x64xbf16>
    %c1 = arith.constant 1 : index
    %c0_4 = arith.constant 0 : index
    %4 = vector.load %arg7[%c1, %c0_4] : memref<24x64xbf16, #tpu.memory_space<vmem>>, vector<16x64xbf16>
    tpu.vector_store %arg7[%c1, %c0_4], %3 {strides = array<i32>} : memref<24x64xbf16, #tpu.memory_space<vmem>>, vector<16x64xbf16>,
    %cst_5 = arith.constant 0.000000e+00 : bf16
    %5 = vector.broadcast %cst_5 : bf16 to vector<7x64xbf16>
    %c17 = arith.constant 17 : index
    %c0_6 = arith.constant 0 : index
    %6 = vector.load %arg7[%c17, %c0_6] : memref<24x64xbf16, #tpu.memory_space<vmem>>, vector<7x64xbf16>
    tpu.vector_store %arg7[%c17, %c0_6], %5 {strides = array<i32>} : memref<24x64xbf16, #tpu.memory_space<vmem>>, vector<7x64xbf16>,
    %cst_7 = arith.constant 0.000000e+00 : f32
    %7 = vector.broadcast %cst_7 : f32 to vector<16x128xf32>
    %c0_8 = arith.constant 0 : index
    %c0_9 = arith.constant 0 : index
    %8 = vector.load %arg7[%c0_8, %c0_9] : memref<24x64xbf16, #tpu.memory_space<vmem>>, vector<16x64xbf16>
    %c0_10 = arith.constant 0 : index
    %c0_11 = arith.constant 0 : index
    %c0_12 = arith.constant 0 : index
    %9 = vector.load %arg2[%c0_10, %c0_11, %c0_12] : memref<3x64x128xbf16, #tpu.memory_space<vmem>>, vector<1x64x128xbf16>
    %10 = vector.shape_cast %9 : vector<1x64x128xbf16> to vector<64x128xbf16>
    %cst_13 = arith.constant dense<0.000000e+00> : vector<16x128xf32>
    %11 = tpu.matmul %8, %10, %cst_13 {dimension_numbers = #tpu.dot_dimension_numbers<[1], [0], [0], [1], [0, 0, 1, 1], [], []>} : vector<16x64xbf16>, vector<64x128xbf16>, vector<16x128xf32> -> vector<16x128xf32>
    %12 = arith.addf %7, %11 : vector<16x128xf32>
    %c1_14 = arith.constant 1 : index
    %c0_15 = arith.constant 0 : index
    %13 = vector.load %arg7[%c1_14, %c0_15] : memref<24x64xbf16, #tpu.memory_space<vmem>>, vector<16x64xbf16>
    %c1_16 = arith.constant 1 : index
    %c0_17 = arith.constant 0 : index
    %c0_18 = arith.constant 0 : index
    %14 = vector.load %arg2[%c1_16, %c0_17, %c0_18] : memref<3x64x128xbf16, #tpu.memory_space<vmem>>, vector<1x64x128xbf16>
    %15 = vector.shape_cast %14 : vector<1x64x128xbf16> to vector<64x128xbf16>
    %cst_19 = arith.constant dense<0.000000e+00> : vector<16x128xf32>
    %16 = tpu.matmul %13, %15, %cst_19 {dimension_numbers = #tpu.dot_dimension_numbers<[1], [0], [0], [1], [0, 0, 1, 1], [], []>} : vector<16x64xbf16>, vector<64x128xbf16>, vector<16x128xf32> -> vector<16x128xf32>
    %17 = arith.addf %12, %16 : vector<16x128xf32>
    %c2 = arith.constant 2 : index
    %c0_20 = arith.constant 0 : index
    %18 = vector.load %arg7[%c2, %c0_20] : memref<24x64xbf16, #tpu.memory_space<vmem>>, vector<16x64xbf16>
    %c2_21 = arith.constant 2 : index
    %c0_22 = arith.constant 0 : index
    %c0_23 = arith.constant 0 : index
    %19 = vector.load %arg2[%c2_21, %c0_22, %c0_23] : memref<3x64x128xbf16, #tpu.memory_space<vmem>>, vector<1x64x128xbf16>
    %20 = vector.shape_cast %19 : vector<1x64x128xbf16> to vector<64x128xbf16>
    %cst_24 = arith.constant dense<0.000000e+00> : vector<16x128xf32>
    %21 = tpu.matmul %18, %20, %cst_24 {dimension_numbers = #tpu.dot_dimension_numbers<[1], [0], [0], [1], [0, 0, 1, 1], [], []>} : vector<16x64xbf16>, vector<64x128xbf16>, vector<16x128xf32> -> vector<16x128xf32>
    %22 = arith.addf %17, %21 : vector<16x128xf32>
    %c0_25 = arith.constant 0 : index
    %c0_26 = arith.constant 0 : index
    %23 = vector.load %arg3[%c0_25, %c0_26] : memref<1x128xf32, #tpu.memory_space<vmem>>, vector<1x128xf32>
    %24 = vector.broadcast %23 : vector<1x128xf32> to vector<16x128xf32>
    %25 = arith.addf %22, %24 : vector<16x128xf32>
    %cst_27 = arith.constant 0.000000e+00 : f32
    %26 = vector.broadcast %cst_27 : f32 to vector<16x128xf32>
    %27 = arith.maximumf %25, %26 : vector<16x128xf32>
    %28 = arith.truncf %27 : vector<16x128xf32> to vector<16x128xbf16>
    %cst_28 = arith.constant 0.000000e+00 : bf16
    %29 = vector.broadcast %cst_28 : bf16 to vector<1x128xbf16>
    %c0_29 = arith.constant 0 : index
    %c0_30 = arith.constant 0 : index
    %30 = vector.load %arg8[%c0_29, %c0_30] : memref<24x128xbf16, #tpu.memory_space<vmem>>, vector<1x128xbf16>
    tpu.vector_store %arg8[%c0_29, %c0_30], %29 {strides = array<i32>} : memref<24x128xbf16, #tpu.memory_space<vmem>>, vector<1x128xbf16>,
    %c1_31 = arith.constant 1 : index
    %c0_32 = arith.constant 0 : index
    %31 = vector.load %arg8[%c1_31, %c0_32] : memref<24x128xbf16, #tpu.memory_space<vmem>>, vector<16x128xbf16>
    tpu.vector_store %arg8[%c1_31, %c0_32], %28 {strides = array<i32>} : memref<24x128xbf16, #tpu.memory_space<vmem>>, vector<16x128xbf16>,
    %cst_33 = arith.constant 0.000000e+00 : bf16
    %32 = vector.broadcast %cst_33 : bf16 to vector<7x128xbf16>
    %c17_34 = arith.constant 17 : index
    %c0_35 = arith.constant 0 : index
    %33 = vector.load %arg8[%c17_34, %c0_35] : memref<24x128xbf16, #tpu.memory_space<vmem>>, vector<7x128xbf16>
    tpu.vector_store %arg8[%c17_34, %c0_35], %32 {strides = array<i32>} : memref<24x128xbf16, #tpu.memory_space<vmem>>, vector<7x128xbf16>,
    %cst_36 = arith.constant 0.000000e+00 : f32
    %34 = vector.broadcast %cst_36 : f32 to vector<16x128xf32>
    %c0_37 = arith.constant 0 : index
    %c0_38 = arith.constant 0 : index
    %35 = vector.load %arg8[%c0_37, %c0_38] : memref<24x128xbf16, #tpu.memory_space<vmem>>, vector<16x128xbf16>
    %c0_39 = arith.constant 0 : index
    %c0_40 = arith.constant 0 : index
    %c0_41 = arith.constant 0 : index
    %36 = vector.load %arg4[%c0_39, %c0_40, %c0_41] : memref<3x128x128xbf16, #tpu.memory_space<vmem>>, vector<1x128x128xbf16>
    %37 = vector.shape_cast %36 : vector<1x128x128xbf16> to vector<128x128xbf16>
    %cst_42 = arith.constant dense<0.000000e+00> : vector<16x128xf32>
    %38 = tpu.matmul %35, %37, %cst_42 {dimension_numbers = #tpu.dot_dimension_numbers<[1], [0], [0], [1], [0, 0, 1, 1], [], []>} : vector<16x128xbf16>, vector<128x128xbf16>, vector<16x128xf32> -> vector<16x128xf32>
    %39 = arith.addf %34, %38 : vector<16x128xf32>
    %c1_43 = arith.constant 1 : index
    %c0_44 = arith.constant 0 : index
    %40 = vector.load %arg8[%c1_43, %c0_44] : memref<24x128xbf16, #tpu.memory_space<vmem>>, vector<16x128xbf16>
    %c1_45 = arith.constant 1 : index
    %c0_46 = arith.constant 0 : index
    %c0_47 = arith.constant 0 : index
    %41 = vector.load %arg4[%c1_45, %c0_46, %c0_47] : memref<3x128x128xbf16, #tpu.memory_space<vmem>>, vector<1x128x128xbf16>
    %42 = vector.shape_cast %41 : vector<1x128x128xbf16> to vector<128x128xbf16>
    %cst_48 = arith.constant dense<0.000000e+00> : vector<16x128xf32>
    %43 = tpu.matmul %40, %42, %cst_48 {dimension_numbers = #tpu.dot_dimension_numbers<[1], [0], [0], [1], [0, 0, 1, 1], [], []>} : vector<16x128xbf16>, vector<128x128xbf16>, vector<16x128xf32> -> vector<16x128xf32>
    %44 = arith.addf %39, %43 : vector<16x128xf32>
    %c2_49 = arith.constant 2 : index
    %c0_50 = arith.constant 0 : index
    %45 = vector.load %arg8[%c2_49, %c0_50] : memref<24x128xbf16, #tpu.memory_space<vmem>>, vector<16x128xbf16>
    %c2_51 = arith.constant 2 : index
    %c0_52 = arith.constant 0 : index
    %c0_53 = arith.constant 0 : index
    %46 = vector.load %arg4[%c2_51, %c0_52, %c0_53] : memref<3x128x128xbf16, #tpu.memory_space<vmem>>, vector<1x128x128xbf16>
    %47 = vector.shape_cast %46 : vector<1x128x128xbf16> to vector<128x128xbf16>
    %cst_54 = arith.constant dense<0.000000e+00> : vector<16x128xf32>
    %48 = tpu.matmul %45, %47, %cst_54 {dimension_numbers = #tpu.dot_dimension_numbers<[1], [0], [0], [1], [0, 0, 1, 1], [], []>} : vector<16x128xbf16>, vector<128x128xbf16>, vector<16x128xf32> -> vector<16x128xf32>
    %49 = arith.addf %44, %48 : vector<16x128xf32>
    %c0_55 = arith.constant 0 : index
    %c0_56 = arith.constant 0 : index
    %50 = vector.load %arg5[%c0_55, %c0_56] : memref<1x128xf32, #tpu.memory_space<vmem>>, vector<1x128xf32>
    %51 = vector.broadcast %50 : vector<1x128xf32> to vector<16x128xf32>
    %52 = arith.addf %49, %51 : vector<16x128xf32>
    %cst_57 = arith.constant 0.000000e+00 : f32
    %53 = vector.broadcast %cst_57 : f32 to vector<16x128xf32>
    %54 = arith.maximumf %52, %53 : vector<16x128xf32>
    %c0_58 = arith.constant 0 : index
    %c0_59 = arith.constant 0 : index
    %c0_60 = arith.constant 0 : index
    %55 = vector.load %arg6[%c0_58, %c0_59, %c0_60] : memref<1x16x128xf32, #tpu.memory_space<vmem>>, vector<1x16x128xf32>
    %56 = vector.shape_cast %55 : vector<1x16x128xf32> to vector<16x128xf32>
    %57 = vector.shape_cast %54 : vector<16x128xf32> to vector<1x16x128xf32>
    tpu.vector_store %arg6[%c0_58, %c0_59, %c0_60], %57 {strides = array<i32>} : memref<1x16x128xf32, #tpu.memory_space<vmem>>, vector<1x16x128xf32>,
    return
  }
  func.func @transform_0(%arg0: i32) -> (i32, i32, i32) {
    %c0_i32 = arith.constant 0 : i32
    %c0_i32_0 = arith.constant 0 : i32
    %c0_i32_1 = arith.constant 0 : i32
    return %arg0, %c0_i32, %c0_i32_0 : i32, i32, i32
  }
  func.func @transform_1(%arg0: i32) -> (i32, i32, i32) {
    %c0_i32 = arith.constant 0 : i32
    %c0_i32_0 = arith.constant 0 : i32
    %c0_i32_1 = arith.constant 0 : i32
    %c0_i32_2 = arith.constant 0 : i32
    return %c0_i32, %c0_i32_0, %c0_i32_1 : i32, i32, i32
  }
  func.func @transform_2(%arg0: i32) -> (i32, i32) {
    %c0_i32 = arith.constant 0 : i32
    %c0_i32_0 = arith.constant 0 : i32
    %c0_i32_1 = arith.constant 0 : i32
    return %c0_i32, %c0_i32_0 : i32, i32
  }
  func.func @transform_3(%arg0: i32) -> (i32, i32, i32) {
    %c0_i32 = arith.constant 0 : i32
    %c0_i32_0 = arith.constant 0 : i32
    %c0_i32_1 = arith.constant 0 : i32
    %c0_i32_2 = arith.constant 0 : i32
    return %c0_i32, %c0_i32_0, %c0_i32_1 : i32, i32, i32
  }
  func.func @transform_4(%arg0: i32) -> (i32, i32) {
    %c0_i32 = arith.constant 0 : i32
    %c0_i32_0 = arith.constant 0 : i32
    %c0_i32_1 = arith.constant 0 : i32
    return %c0_i32, %c0_i32_0 : i32, i32
  }
  func.func @transform_5(%arg0: i32) -> (i32, i32, i32) {
    %c0_i32 = arith.constant 0 : i32
    %c0_i32_0 = arith.constant 0 : i32
    %c0_i32_1 = arith.constant 0 : i32
    return %arg0, %c0_i32, %c0_i32_0 : i32, i32, i32
  }
}

</mosaic_0001>

<llo_original>
// kernel: tpu_custom_call.1
$region0: #{tpu_custom_call.1}
  #allocation0 [shape = 'u32[]', space=smem, size = 0x4, offset = 0x4, fixed_abs, tag = 'smem constant byte address 0x4 - core index']
  #allocation1 [shape = 'u32[144,128]{1,0:T(1,128)}', space=vmem, size = 0x12000, scoped, tag = 'internal scratch']
  #allocation2 [shape = 'bf16[24,64]{1,0:T(8,128)(2,1)}', space=vmem, size = 0x1800, scoped, tag = 'scratch operand']
  #allocation3 [shape = 'bf16[24,128]{1,0:T(8,128)(2,1)}', space=vmem, size = 0x1800, scoped, tag = 'scratch operand']
  %s0 = inlined_call_operand.hbm [shape: bf16[2,16,64], index: 0, kind: input, shape index: {}]
  %s1 = inlined_call_operand.hbm [shape: bf16[3,64,128], index: 1, kind: input, shape index: {}]
  %s2 = inlined_call_operand.vmem [shape: f32[1,128], index: 2, kind: input, shape index: {}]
  %s3 = inlined_call_operand.hbm [shape: bf16[3,128,128], index: 3, kind: input, shape index: {}]
  %s4 = inlined_call_operand.vmem [shape: f32[1,128], index: 4, kind: input, shape index: {}]
  %s5 = inlined_call_operand.hbm [shape: f32[2,16,128], index: 5, kind: output, shape index: {}]
  %s6 = sld [smem:[#allocation0]]
  $region65: #{tpu_custom_call.1} parent=0
    _
  %s8 = ssub.s32 1, %s6
  %s9 = scalar_select 0, %s8, %s6
  $region1: #{tpu_custom_call.1} parent=0
    #allocation4 [shape = 'u8[8192]{0}', space=vmem, size = 0x2000, scoped, tag = 'input window, operand 0']
    #allocation5 [shape = 's32[2]{0}', space=sflag, size = 0x8, scoped, tag = 'scoped memory for tpu_custom_call.1']
    #allocation6 [shape = 's32[2]{0}', space=sflag, size = 0x8, scoped, tag = 'scoped memory for tpu_custom_call.1']
    #allocation7 [shape = 'u8[49152]{0}', space=vmem, size = 0xc000, scoped, tag = 'input window, operand 1, single buffered']
    #allocation8 [shape = 's32[1]{0}', space=sflag, size = 0x4, scoped, tag = 'scoped memory for tpu_custom_call.1']
    #allocation9 [shape = 'u8[98304]{0}', space=vmem, size = 0x18000, scoped, tag = 'input window, operand 3, single buffered']
    #allocation10 [shape = 'u8[16384]{0}', space=vmem, size = 0x4000, scoped, tag = 'output window, operand 0']
    %10 = vsyncpa [#allocation5], 0
    %s11 = scalar_lea.sflag [#allocation5], 1
    %12 = vsyncpa %s11, 0
    %13 = vsyncpa [#allocation8], 0
    %14 = vsyncpa [#allocation6], 0
    %s15 = scalar_lea.sflag [#allocation6], 1
    %16 = vsyncpa %s15, 0
    loop: start=0, step=1, limit=4
    $region2: #{tpu_custom_call.1} parent=1 // loop_pre_header
      _
    $region3: #{tpu_custom_call.1} parent=1 // loop_header
      %s18 = sphi 0, %s22
      %p19 = scmp.ge.s32.totalorder %s18, 4
      %s28 = sphi 0, %s30
      %s31 = sphi 0, %s28
      %s32 = sphi 0, %s31
      %s48 = sphi 0, %s32
      %s52 = sphi 0, %s52
      %s54 = sphi 0, %s52
      %s55 = sphi 0, %s54
      %s69 = sphi 0, %s55
      %s73 = sphi 0, %s73
      %s75 = sphi 0, %s73
      %s76 = sphi 0, %s75
      %s90 = sphi 0, %s76
      %s94 = sphi 0, %s94
      %s96 = sphi 0, %s94
      %s97 = sphi 0, %s96
      %s111 = sphi 0, %s97
      %s115 = sphi 0, %s115
      %s117 = sphi 0, %s115
      %s118 = sphi 0, %s117
      %s132 = sphi 0, %s118
      %s138 = sphi 0, %s140
      %s141 = sphi 0, %s138
      %s142 = sphi 0, %s141
      %s158 = sphi 0, %s142
    $region4: #{tpu_custom_call.1} parent=1 // loop_header_branch
      %21 = sbr.rel (%p19) target = $region8
    $region5: #{tpu_custom_call.1} parent=1 // loop_body
      %s23 = ssub.s32 %s18, 1
      %s24 = ssub.s32 %s18, 2
      %s25 = sadd.s32 %s18, 1
      %s26 = ssub.s32 %s18, %s25
      %p27 = scmp.eq.s32.totalorder %s26, 0
      %s29 = sadd.s32 %s28, 1
      %s30 = scalar_select %p27, %s28, %s29
      %p33 = pneg %p27
      %p34 = scmp.eq.s32.totalorder %s18, 1
      %p35 = por %p33, %p34
      %p36 = scmp.ne.s32.totalorder %s28, %s31
      %p37 = scmp.eq.s32.totalorder %s18, 0
      %p38 = por %p36, %p37
      %p39 = scmp.ne.s32.totalorder %s28, %s31
      %p40 = scmp.eq.s32.totalorder %s23, 1
      %p41 = por %p39, %p40
      %p42 = scmp.ne.s32.totalorder %s31, %s32
      %p43 = scmp.eq.s32.totalorder %s23, 0
      %p44 = por %p42, %p43
      %p45 = scmp.ne.s32.totalorder %s31, %s32
      %p46 = scmp.eq.s32.totalorder %s24, 1
      %p47 = por %p45, %p46
      %p49 = scmp.ne.s32.totalorder %s32, %s48
      %p50 = scmp.eq.s32.totalorder %s24, 0
      %p51 = por %p49, %p50
      %s53 = sadd.s32 %s52, 1
      %p56 = scmp.eq.s32.totalorder %s18, 1
      %p57 = scmp.ne.s32.totalorder %s52, %s54
      %p58 = scmp.eq.s32.totalorder %s18, 0
      %p59 = por %p57, %p58
      %p60 = scmp.ne.s32.totalorder %s52, %s54
      %p61 = scmp.eq.s32.totalorder %s23, 1
      %p62 = por %p60, %p61
      %p63 = scmp.ne.s32.totalorder %s54, %s55
      %p64 = scmp.eq.s32.totalorder %s23, 0
      %p65 = por %p63, %p64
      %p66 = scmp.ne.s32.totalorder %s54, %s55
      %p67 = scmp.eq.s32.totalorder %s24, 1
      %p68 = por %p66, %p67
      %p70 = scmp.ne.s32.totalorder %s55, %s69
      %p71 = scmp.eq.s32.totalorder %s24, 0
      %p72 = por %p70, %p71
      %s74 = sadd.s32 %s73, 1
      %p77 = scmp.eq.s32.totalorder %s18, 1
      %p78 = scmp.ne.s32.totalorder %s73, %s75
      %p79 = scmp.eq.s32.totalorder %s18, 0
      %p80 = por %p78, %p79
      %p81 = scmp.ne.s32.totalorder %s73, %s75
      %p82 = scmp.eq.s32.totalorder %s23, 1
      %p83 = por %p81, %p82
      %p84 = scmp.ne.s32.totalorder %s75, %s76
      %p85 = scmp.eq.s32.totalorder %s23, 0
      %p86 = por %p84, %p85
      %p87 = scmp.ne.s32.totalorder %s75, %s76
      %p88 = scmp.eq.s32.totalorder %s24, 1
      %p89 = por %p87, %p88
      %p91 = scmp.ne.s32.totalorder %s76, %s90
      %p92 = scmp.eq.s32.totalorder %s24, 0
      %p93 = por %p91, %p92
      %s95 = sadd.s32 %s94, 1
      %p98 = scmp.eq.s32.totalorder %s18, 1
      %p99 = scmp.ne.s32.totalorder %s94, %s96
      %p100 = scmp.eq.s32.totalorder %s18, 0
      %p101 = por %p99, %p100
      %p102 = scmp.ne.s32.totalorder %s94, %s96
      %p103 = scmp.eq.s32.totalorder %s23, 1
      %p104 = por %p102, %p103
      %p105 = scmp.ne.s32.totalorder %s96, %s97
      %p106 = scmp.eq.s32.totalorder %s23, 0
      %p107 = por %p105, %p106
      %p108 = scmp.ne.s32.totalorder %s96, %s97
      %p109 = scmp.eq.s32.totalorder %s24, 1
      %p110 = por %p108, %p109
      %p112 = scmp.ne.s32.totalorder %s97, %s111
      %p113 = scmp.eq.s32.totalorder %s24, 0
      %p114 = por %p112, %p113
      %s116 = sadd.s32 %s115, 1
      %p119 = scmp.eq.s32.totalorder %s18, 1
      %p120 = scmp.ne.s32.totalorder %s115, %s117
      %p121 = scmp.eq.s32.totalorder %s18, 0
      %p122 = por %p120, %p121
      %p123 = scmp.ne.s32.totalorder %s115, %s117
      %p124 = scmp.eq.s32.totalorder %s23, 1
      %p125 = por %p123, %p124
      %p126 = scmp.ne.s32.totalorder %s117, %s118
      %p127 = scmp.eq.s32.totalorder %s23, 0
      %p128 = por %p126, %p127
      %p129 = scmp.ne.s32.totalorder %s117, %s118
      %p130 = scmp.eq.s32.totalorder %s24, 1
      %p131 = por %p129, %p130
      %p133 = scmp.ne.s32.totalorder %s118, %s132
      %p134 = scmp.eq.s32.totalorder %s24, 0
      %p135 = por %p133, %p134
      %s136 = ssub.s32 %s18, %s25
      %p137 = scmp.eq.s32.totalorder %s136, 0
      %s139 = sadd.s32 %s138, 1
      %s140 = scalar_select %p137, %s138, %s139
      %p143 = pneg %p137
      %p144 = scmp.eq.s32.totalorder %s18, 1
      %p145 = por %p143, %p144
      %p146 = scmp.ne.s32.totalorder %s138, %s141
      %p147 = scmp.eq.s32.totalorder %s18, 0
      %p148 = por %p146, %p147
      %p149 = scmp.ne.s32.totalorder %s138, %s141
      %p150 = scmp.eq.s32.totalorder %s23, 1
      %p151 = por %p149, %p150
      %p152 = scmp.ne.s32.totalorder %s141, %s142
      %p153 = scmp.eq.s32.totalorder %s23, 0
      %p154 = por %p152, %p153
      %p155 = scmp.ne.s32.totalorder %s141, %s142
      %p156 = scmp.eq.s32.totalorder %s24, 1
      %p157 = por %p155, %p156
      %p159 = scmp.ne.s32.totalorder %s142, %s158
      %p160 = scmp.eq.s32.totalorder %s24, 0
      %p161 = por %p159, %p160
      %p162 = scmp.le.s32.totalorder 1, %s18
      %p163 = scmp.lt.s32.totalorder %s18, 3
      %p164 = pnand %p162, %p163
      %p165 = pneg %p164
      // Predicated region
      $region9: #{tpu_custom_call.1} parent=5 // pred_check
        _
      $region10: #{tpu_custom_call.1} parent=5 // pred_check_branch
        %167 = sbr.rel (%p164) target = $region12
      $region11: #{tpu_custom_call.1} parent=5 // pred_region
        %s168 = ssub.s32 %s18, 1
        // Predicated region
        $region13: #{tpu_custom_call.1} parent=11 // pred_check
          %p169 = pneg %p65
        $region14: #{tpu_custom_call.1} parent=11 // pred_check_branch
          %171 = sbr.rel (%p169) target = $region16
        $region15: #{tpu_custom_call.1} parent=11 // pred_region
          %s173 = ssub.s32 1536, 1536
          %174 = vsyncadd [#allocation8], %s173
          %s175 = sshll.u32 [#allocation7], 4
          %s176 = int_to_ptr.vmem [resolvable:$true] %s175
          %181 = dma.hbm_to_vmem [thread:$0]  %s1, 1536, %s176, [#allocation8], 64, 64, 4
        $region16: #{tpu_custom_call.1} parent=11 // pred_fallthru
          _
        // Predicated region
        $region17: #{tpu_custom_call.1} parent=11 // pred_check
          %p182 = pneg %p86
        $region18: #{tpu_custom_call.1} parent=11 // pred_check_branch
          %184 = sbr.rel (%p182) target = $region20
        $region19: #{tpu_custom_call.1} parent=11 // pred_region
          _
        $region20: #{tpu_custom_call.1} parent=11 // pred_fallthru
          _
        // Predicated region
        $region21: #{tpu_custom_call.1} parent=11 // pred_check
          %p185 = pneg %p107
        $region22: #{tpu_custom_call.1} parent=11 // pred_check_branch
          %187 = sbr.rel (%p185) target = $region24
        $region23: #{tpu_custom_call.1} parent=11 // pred_region
          %s189 = ssub.s32 3072, 3072
          %190 = vsyncadd [#allocation8], %s189
          %s191 = sshll.u32 [#allocation9], 4
          %s192 = int_to_ptr.vmem [resolvable:$true] %s191
          %197 = dma.hbm_to_vmem [thread:$0]  %s3, 3072, %s192, [#allocation8], 64, 64, 4
        $region24: #{tpu_custom_call.1} parent=11 // pred_fallthru
          _
        // Predicated region
        $region25: #{tpu_custom_call.1} parent=11 // pred_check
          %p198 = pneg %p128
        $region26: #{tpu_custom_call.1} parent=11 // pred_check_branch
          %200 = sbr.rel (%p198) target = $region28
        $region27: #{tpu_custom_call.1} parent=11 // pred_region
          _
        $region28: #{tpu_custom_call.1} parent=11 // pred_fallthru
          _
      $region12: #{tpu_custom_call.1} parent=5 // pred_fallthru
        _
      %p201 = scmp.lt.s32.totalorder %s18, 2
      // Predicated region
      $region29: #{tpu_custom_call.1} parent=5 // pred_check
        %p202 = pneg %p201
      $region30: #{tpu_custom_call.1} parent=5 // pred_check_branch
        %204 = sbr.rel (%p202) target = $region32
      $region31: #{tpu_custom_call.1} parent=5 // pred_region
        // Predicated region
        $region33: #{tpu_custom_call.1} parent=31 // pred_check
          %p205 = pneg %p38
        $region34: #{tpu_custom_call.1} parent=31 // pred_check_branch
          %207 = sbr.rel (%p205) target = $region36
        $region35: #{tpu_custom_call.1} parent=31 // pred_region
          %s208 = sand.u32 %s28, 1
          %s209 = scalar_lea.sflag [#allocation5], %s208
          %s210 = sand.u32 %s28, 1
          %s211 = smul.addr %s210, 8
          %s212 = scalar_lea.vmem [#allocation4], %s211
          %s214 = ssub.s32 128, 128
          %215 = vsyncadd %s209, %s214
          %s216 = smul.addr %s18, 2
          %s217 = smul.addr %s216, 64
          %s218 = scalar_lea.hbm %s0, %s217
          %s219 = sshll.u32 %s212, 4
          %s220 = int_to_ptr.vmem [resolvable:$true] %s219
          %225 = dma.hbm_to_vmem [thread:$0]  %s218, 128, %s220, %s209, 64, 64, 4
        $region36: #{tpu_custom_call.1} parent=31 // pred_fallthru
          _
      $region32: #{tpu_custom_call.1} parent=5 // pred_fallthru
        _
      %p226 = scmp.le.s32.totalorder 1, %s18
      %p227 = scmp.lt.s32.totalorder %s18, 3
      %p228 = pnand %p226, %p227
      %p229 = pneg %p228
      // Predicated region
      $region37: #{tpu_custom_call.1} parent=5 // pred_check
        _
      $region38: #{tpu_custom_call.1} parent=5 // pred_check_branch
        %231 = sbr.rel (%p228) target = $region40
      $region39: #{tpu_custom_call.1} parent=5 // pred_region
        %s232 = ssub.s32 %s18, 1
        %s233 = sand.u32 %s31, 1
        %s234 = scalar_lea.sflag [#allocation5], %s233
        %s235 = sand.u32 %s31, 1
        %s236 = smul.addr %s235, 8
        %s237 = scalar_lea.vmem [#allocation4], %s236
        // Predicated region
        $region41: #{tpu_custom_call.1} parent=39 // pred_check
          %p238 = pneg %p44
        $region42: #{tpu_custom_call.1} parent=39 // pred_check_branch
          %240 = sbr.rel (%p238) target = $region44
        $region43: #{tpu_custom_call.1} parent=39 // pred_region
          %241 = dma.done %s234, 128
        $region44: #{tpu_custom_call.1} parent=39 // pred_fallthru
          _
        // Predicated region
        $region45: #{tpu_custom_call.1} parent=39 // pred_check
          %p242 = pneg %p65
        $region46: #{tpu_custom_call.1} parent=39 // pred_check_branch
          %244 = sbr.rel (%p242) target = $region48
        $region47: #{tpu_custom_call.1} parent=39 // pred_region
          %245 = dma.done [#allocation8], 1536
        $region48: #{tpu_custom_call.1} parent=39 // pred_fallthru
          _
        // Predicated region
        $region49: #{tpu_custom_call.1} parent=39 // pred_check
          %p246 = pneg %p107
        $region50: #{tpu_custom_call.1} parent=39 // pred_check_branch
          %248 = sbr.rel (%p246) target = $region52
        $region51: #{tpu_custom_call.1} parent=39 // pred_region
          %249 = dma.done [#allocation8], 3072
        $region52: #{tpu_custom_call.1} parent=39 // pred_fallthru
          _
        %s250 = sand.u32 %s31, 1
        %s251 = scalar_lea.sflag [#allocation5], %s250
        %s252 = sand.u32 %s31, 1
        %s253 = smul.addr %s252, 8
        %s254 = scalar_lea.vmem [#allocation4], %s253
        %p255 = pneg %p44
        %p256 = pneg %p41
        %p257 = pneg %p65
        %p258 = pneg %p62
        %p259 = pneg %p86
        %p260 = pneg %p83
        %p261 = pneg %p107
        %p262 = pneg %p104
        %p263 = pneg %p128
        %p264 = pneg %p125
        %p265 = pneg %p154
        %p266 = pneg %p151
        %s267 = sand.u32 %s141, 1
        %s268 = scalar_lea.sflag [#allocation6], %s267
        %s269 = sand.u32 %s141, 1
        %s270 = smul.addr %s269, 16
        %s271 = scalar_lea.vmem [#allocation10], %s270
        %vm273 = vcmask 516096
        %vm274 = vsmask.f32 256
        %vm275 = vmand %vm273, %vm274
        %v276 = vld [vmem:[#allocation2] sm:$0x1]
        %v277 = vsel %vm275, 0, %v276
        %278 = vst [vmem:[#allocation2] sm:$0x1] %v277
        %v279 = vld [vmem:[%s237] sm:$0xf]
        %v280 = vld [vmem:[%s237 + $0x4] sm:$0xf]
        %vm281 = vsmask.f32 4368
        %vm282 = vmor %vm274, %vm281
        %v284 = vshrl.u32 %v279, 16
        %v286 = vrot.slane %v284, 7
        %v287 = vshll.u32 %v279, 16
        %v289 = vor.u32 %v286, %v287
        %v290 = vrot.slane %v286, 4
        %v292 = vshrl.u32 %v280, 16
        %v294 = vrot.slane %v292, 7
        %v295 = vshll.u32 %v280, 16
        %v297 = vor.u32 %v294, %v295
        %v298 = vsel %vm282, %v290, %v297
        %v299 = vrot.slane %v294, 4
        %vm303 = vcmask 519168
        %vm304 = vsmask.f32 7938
        %vm305 = vmand %vm303, %vm304
        %v306 = vld [vmem:[#allocation2] sm:$0xf]
        %v307 = vsel %vm305, %v289, %v306
        %308 = vst [vmem:[#allocation2] sm:$0xf] %v307
        %vm309 = vcmask 519168
        %310 = vst.msk [vmem:[#allocation2 + $0x4] sm:$0xf] %vm309, %v298
        %v311 = vld [vmem:[#allocation2 + $0x8] sm:$0x1]
        %v312 = vsel %vm275, %v299, %v311
        %313 = vst [vmem:[#allocation2 + $0x8] sm:$0x1] %v312
        %v314 = vld [vmem:[#allocation2 + $0x8] sm:$0xf]
        %v315 = vsel %vm305, 0, %v314
        %316 = vst [vmem:[#allocation2 + $0x8] sm:$0xf] %v315
        %v317 = vld [vmem:[#allocation2] sm:$0xf]
        %v318 = vld [vmem:[#allocation2 + $0x4] sm:$0xf]
        %v319 = vld [vmem:[#allocation7] sm:$0xf]
        %v320 = vld [vmem:[#allocation7 + $0x4] sm:$0xf]
        %v321 = vld [vmem:[#allocation7 + $0x8] sm:$0xf]
        %v322 = vld [vmem:[#allocation7 + $0xc] sm:$0xf]
        %v323 = vld [vmem:[#allocation7 + $0x10] sm:$0xf]
        %v324 = vld [vmem:[#allocation7 + $0x14] sm:$0xf]
        %v325 = vld [vmem:[#allocation7 + $0x18] sm:$0xf]
        %v326 = vld [vmem:[#allocation7 + $0x1c] sm:$0xf]
        %v327 = vld [vmem:[#allocation2 + $0x8] sm:$0x1]
        %s328 = scalar_lea.vmem [#allocation7], 32
        %v329 = vld [vmem:[%s328] sm:$0xf]
        %v330 = vld [vmem:[%s328 + $0x4] sm:$0xf]
        %v331 = vld [vmem:[%s328 + $0x8] sm:$0xf]
        %v332 = vld [vmem:[%s328 + $0xc] sm:$0xf]
        %v333 = vld [vmem:[%s328 + $0x10] sm:$0xf]
        %v334 = vld [vmem:[%s328 + $0x14] sm:$0xf]
        %v335 = vld [vmem:[%s328 + $0x18] sm:$0xf]
        %v336 = vld [vmem:[%s328 + $0x1c] sm:$0xf]
        %v340 = vunpack.c.l.b16 %v317
        %v341 = vunpack.c.l.b16 %v318
        %v342 = vunpack.c.l.b16 %v327
        %v343 = vpack.c.b16 %v341, %v340
        %v344 = vpack.c.b16 %v342, %v342
        %vm345 = vsmask.f32 7424
        %v347 = vshrl.u32 %v343, 16
        %v349 = vshll.u32 %v343, 16
        %v351 = vrot.slane %v349, 1
        %v352 = vor.u32 %v347, %v351
        %v354 = vshll.u32 %v344, 16
        %v356 = vrot.slane %v354, 1
        %v357 = vsel %vm345, %v352, %v356
        %v366 = vunpack.c.l.b16 %v329
        %v367 = vunpack.c.l.b16 %v330
        %v368 = vunpack.c.l.b16 %v331
        %v369 = vunpack.c.l.b16 %v332
        %v370 = vunpack.c.l.b16 %v333
        %v371 = vunpack.c.l.b16 %v334
        %v372 = vunpack.c.l.b16 %v335
        %v373 = vunpack.c.l.b16 %v336
        %v374 = vpack.c.b16 %v367, %v366
        %v375 = vpack.c.b16 %v369, %v368
        %v376 = vpack.c.b16 %v371, %v370
        %v377 = vpack.c.b16 %v373, %v372
        %vm382 = vcmask 523264
        %v384 = vsel %vm382, %v357, 0
        %386 = vmatprep.subr.bf16.mxu0 0
        %387 = vmatpush1.bf16.msra.mxu0 %v374
        %388 = vmatprep.subr.bf16.mxu0 0
        %389 = vmatpush1.bf16.msra.mxu0 %v375
        %390 = vmatprep.subr.bf16.mxu0 0
        %391 = vmatpush1.bf16.msra.mxu0 %v376
        %392 = vmatprep.subr.bf16.mxu0 0
        %393 = vmatpush1.bf16.msra.mxu0 %v377
        %394 = vmatprep.subr.bf16.mxu0 0
        %395 = vmatpush1.bf16.msra.mxu0 0
        %396 = vmatprep.subr.bf16.mxu0 0
        %397 = vmatpush1.bf16.msra.mxu0 0
        %398 = vmatprep.subr.bf16.mxu0 0
        %399 = vmatpush1.bf16.msra.mxu0 0
        %400 = vmatprep.subr.bf16.mxu0 0
        %401 = vmatpush1.bf16.msra.mxu0 0
        %402 = vmatprep.subr.bf16.mxu0 0
        %403 = vmatpush1.bf16.msra.mxu0 0
        %404 = vmatprep.subr.bf16.mxu0 0
        %405 = vmatpush1.bf16.msra.mxu0 0
        %406 = vmatprep.subr.bf16.mxu0 0
        %407 = vmatpush1.bf16.msra.mxu0 0
        %408 = vmatprep.subr.bf16.mxu0 0
        %409 = vmatpush1.bf16.msra.mxu0 0
        %410 = vmatprep.subr.bf16.mxu0 0
        %411 = vmatpush1.bf16.msra.mxu0 0
        %412 = vmatprep.subr.bf16.mxu0 0
        %413 = vmatpush1.bf16.msra.mxu0 0
        %414 = vmatprep.subr.bf16.mxu0 0
        %415 = vmatpush1.bf16.msra.mxu0 0
        %416 = vmatprep.subr.bf16.mxu0 0
        %417 = vmatpush1.bf16.msra.mxu0 0
        %418 = vmatprep.mubr.bf16.mxu0 0
        %419 = vmatmul.mubr.bf16.gmra.mrb[0].mxu0 %v384
        %v420 = vpop.f32.mrb[0].mxu0
        %v421 = vadd.f32 0.0, %v420
        %v422 = vpop.f32.mrb[0].mxu0
        %v423 = vpop.f32.mrb[0].mxu0
        %v424 = vadd.f32 0.0, %v423
        %v425 = vpop.f32.mrb[0].mxu0
        %426 = vdwg.mxu0
        %v435 = vunpack.c.l.b16 %v319
        %v436 = vunpack.c.l.b16 %v320
        %v437 = vunpack.c.l.b16 %v321
        %v438 = vunpack.c.l.b16 %v322
        %v439 = vunpack.c.l.b16 %v323
        %v440 = vunpack.c.l.b16 %v324
        %v441 = vunpack.c.l.b16 %v325
        %v442 = vunpack.c.l.b16 %v326
        %v443 = vpack.c.b16 %v436, %v435
        %v444 = vpack.c.b16 %v438, %v437
        %v445 = vpack.c.b16 %v440, %v439
        %v446 = vpack.c.b16 %v442, %v441
        %v451 = vsel %vm382, %v343, 0
        %453 = vmatprep.subr.bf16.mxu0 0
        %454 = vmatpush1.bf16.msra.mxu0 %v443
        %455 = vmatprep.subr.bf16.mxu0 0
        %456 = vmatpush1.bf16.msra.mxu0 %v444
        %457 = vmatprep.subr.bf16.mxu0 0
        %458 = vmatpush1.bf16.msra.mxu0 %v445
        %459 = vmatprep.subr.bf16.mxu0 0
        %460 = vmatpush1.bf16.msra.mxu0 %v446
        %461 = vmatprep.subr.bf16.mxu0 0
        %462 = vmatpush1.bf16.msra.mxu0 0
        %463 = vmatprep.subr.bf16.mxu0 0
        %464 = vmatpush1.bf16.msra.mxu0 0
        %465 = vmatprep.subr.bf16.mxu0 0
        %466 = vmatpush1.bf16.msra.mxu0 0
        %467 = vmatprep.subr.bf16.mxu0 0
        %468 = vmatpush1.bf16.msra.mxu0 0
        %469 = vmatprep.subr.bf16.mxu0 0
        %470 = vmatpush1.bf16.msra.mxu0 0
        %471 = vmatprep.subr.bf16.mxu0 0
        %472 = vmatpush1.bf16.msra.mxu0 0
        %473 = vmatprep.subr.bf16.mxu0 0
        %474 = vmatpush1.bf16.msra.mxu0 0
        %475 = vmatprep.subr.bf16.mxu0 0
        %476 = vmatpush1.bf16.msra.mxu0 0
        %477 = vmatprep.subr.bf16.mxu0 0
        %478 = vmatpush1.bf16.msra.mxu0 0
        %479 = vmatprep.subr.bf16.mxu0 0
        %480 = vmatpush1.bf16.msra.mxu0 0
        %481 = vmatprep.subr.bf16.mxu0 0
        %482 = vmatpush1.bf16.msra.mxu0 0
        %483 = vmatprep.subr.bf16.mxu0 0
        %484 = vmatpush1.bf16.msra.mxu0 0
        %485 = vmatprep.mubr.bf16.mxu0 0
        %486 = vmatmul.mubr.bf16.gmra.mrb[0].mxu0 %v451
        %v487 = vpop.f32.mrb[0].mxu0
        %v488 = vadd.f32 %v421, %v487
        %v489 = vpop.f32.mrb[0].mxu0
        %v490 = vpop.f32.mrb[0].mxu0
        %v491 = vadd.f32 %v424, %v490
        %v492 = vpop.f32.mrb[0].mxu0
        %493 = vdwg.mxu0
        %v494 = vld [vmem:[#allocation2] sm:$0xe]
        %s495 = scalar_lea.vmem [#allocation7], 64
        %v496 = vld [vmem:[%s495] sm:$0xf]
        %v497 = vld [vmem:[%s495 + $0x4] sm:$0xf]
        %v498 = vld [vmem:[%s495 + $0x8] sm:$0xf]
        %v499 = vld [vmem:[%s495 + $0xc] sm:$0xf]
        %v500 = vld [vmem:[%s495 + $0x10] sm:$0xf]
        %v501 = vld [vmem:[%s495 + $0x14] sm:$0xf]
        %v502 = vld [vmem:[%s495 + $0x18] sm:$0xf]
        %v503 = vld [vmem:[%s495 + $0x1c] sm:$0xf]
        %v505 = vunpack.c.l.b16 %v494
        %v506 = vpack.c.b16 %v341, %v505
        %vm507 = vcmask 1046528
        %v508 = vrot.slane %v506, 1
        %v509 = vrot.slane %v344, 1
        %v510 = vsel %vm507, %v508, %v509
        %v519 = vunpack.c.l.b16 %v496
        %v520 = vunpack.c.l.b16 %v497
        %v521 = vunpack.c.l.b16 %v498
        %v522 = vunpack.c.l.b16 %v499
        %v523 = vunpack.c.l.b16 %v500
        %v524 = vunpack.c.l.b16 %v501
        %v525 = vunpack.c.l.b16 %v502
        %v526 = vunpack.c.l.b16 %v503
        %v527 = vpack.c.b16 %v520, %v519
        %v528 = vpack.c.b16 %v522, %v521
        %v529 = vpack.c.b16 %v524, %v523
        %v530 = vpack.c.b16 %v526, %v525
        %v536 = vsel %vm382, %v510, 0
        %538 = vmatprep.subr.bf16.mxu0 0
        %539 = vmatpush1.bf16.msra.mxu0 %v527
        %540 = vmatprep.subr.bf16.mxu0 0
        %541 = vmatpush1.bf16.msra.mxu0 %v528
        %542 = vmatprep.subr.bf16.mxu0 0
        %543 = vmatpush1.bf16.msra.mxu0 %v529
        %544 = vmatprep.subr.bf16.mxu0 0
        %545 = vmatpush1.bf16.msra.mxu0 %v530
        %546 = vmatprep.subr.bf16.mxu0 0
        %547 = vmatpush1.bf16.msra.mxu0 0
        %548 = vmatprep.subr.bf16.mxu0 0
        %549 = vmatpush1.bf16.msra.mxu0 0
        %550 = vmatprep.subr.bf16.mxu0 0
        %551 = vmatpush1.bf16.msra.mxu0 0
        %552 = vmatprep.subr.bf16.mxu0 0
        %553 = vmatpush1.bf16.msra.mxu0 0
        %554 = vmatprep.subr.bf16.mxu0 0
        %555 = vmatpush1.bf16.msra.mxu0 0
        %556 = vmatprep.subr.bf16.mxu0 0
        %557 = vmatpush1.bf16.msra.mxu0 0
        %558 = vmatprep.subr.bf16.mxu0 0
        %559 = vmatpush1.bf16.msra.mxu0 0
        %560 = vmatprep.subr.bf16.mxu0 0
        %561 = vmatpush1.bf16.msra.mxu0 0
        %562 = vmatprep.subr.bf16.mxu0 0
        %563 = vmatpush1.bf16.msra.mxu0 0
        %564 = vmatprep.subr.bf16.mxu0 0
        %565 = vmatpush1.bf16.msra.mxu0 0
        %566 = vmatprep.subr.bf16.mxu0 0
        %567 = vmatpush1.bf16.msra.mxu0 0
        %568 = vmatprep.subr.bf16.mxu0 0
        %569 = vmatpush1.bf16.msra.mxu0 0
        %570 = vmatprep.mubr.bf16.mxu0 0
        %571 = vmatmul.mubr.bf16.gmra.mrb[0].mxu0 %v536
        %v572 = vpop.f32.mrb[0].mxu0
        %v573 = vadd.f32 0.0, %v572
        %v574 = vpop.f32.mrb[0].mxu0
        %v575 = vpop.f32.mrb[0].mxu0
        %v576 = vadd.f32 0.0, %v575
        %v577 = vpop.f32.mrb[0].mxu0
        %578 = vdwg.mxu0
        %v579 = vadd.f32 %v488, %v573
        %v580 = vadd.f32 %v491, %v576
        %v581 = vld [vmem:[%s2] sm:$0x1]
        %v583 = vlaneseq
        %v584 = vshrl.u32 %v583, 7
        %v585 = vsub.s32 0, %v584
        %v586 = vrot.slane %v581, %v585
        %v588 = vadd.f32 %v579, %v586
        %v589 = vadd.f32 %v580, %v586
        %v590 = vmax.f32 %v588, 0.0
        %v591 = vmax.f32 %v589, 0.0
        %v592 = vpack.c.bf16 %v591, %v590
        %vm593 = vcmask 1040384
        %vm594 = vmand %vm593, %vm274
        %v595 = vld [vmem:[#allocation3] sm:$0x1]
        %v596 = vsel %vm594, 0, %v595
        %597 = vst [vmem:[#allocation3] sm:$0x1] %v596
        %v599 = vunpack.c.l.b16 %v592
        %v600 = vunpack.c.h.b16 %v592
        %v601 = vpack.c.b16 %v599, %v599
        %v602 = vpack.c.b16 %v600, %v600
        %v604 = vshrl.u32 %v601, 16
        %v606 = vrot.slane %v604, 7
        %v607 = vshll.u32 %v601, 16
        %v609 = vor.u32 %v606, %v607
        %v610 = vrot.slane %v606, 4
        %v612 = vshrl.u32 %v602, 16
        %v614 = vrot.slane %v612, 7
        %v615 = vshll.u32 %v602, 16
        %v617 = vor.u32 %v614, %v615
        %v618 = vsel %vm282, %v610, %v617
        %v619 = vrot.slane %v614, 4
        %vm623 = vcmask 1043456
        %vm624 = vmand %vm623, %vm304
        %v625 = vld [vmem:[#allocation3] sm:$0xf]
        %v626 = vsel %vm624, %v609, %v625
        %627 = vst [vmem:[#allocation3] sm:$0xf] %v626
        %628 = vst [vmem:[#allocation3 + $0x4] sm:$0xf] %v618
        %v629 = vld [vmem:[#allocation3 + $0x8] sm:$0x1]
        %v630 = vsel %vm594, %v619, %v629
        %631 = vst [vmem:[#allocation3 + $0x8] sm:$0x1] %v630
        %v632 = vld [vmem:[#allocation3 + $0x8] sm:$0xf]
        %v633 = vsel %vm624, 0, %v632
        %634 = vst [vmem:[#allocation3 + $0x8] sm:$0xf] %v633
        %v635 = vld [vmem:[#allocation3] sm:$0xf]
        %v636 = vld [vmem:[#allocation3 + $0x4] sm:$0xf]
        %v637 = vld [vmem:[#allocation9] sm:$0xf]
        %v638 = vld [vmem:[#allocation9 + $0x4] sm:$0xf]
        %v639 = vld [vmem:[#allocation9 + $0x8] sm:$0xf]
        %v640 = vld [vmem:[#allocation9 + $0xc] sm:$0xf]
        %v641 = vld [vmem:[#allocation9 + $0x10] sm:$0xf]
        %v642 = vld [vmem:[#allocation9 + $0x14] sm:$0xf]
        %v643 = vld [vmem:[#allocation9 + $0x18] sm:$0xf]
        %v644 = vld [vmem:[#allocation9 + $0x1c] sm:$0xf]
        %v645 = vld [vmem:[#allocation9 + $0x20] sm:$0xf]
        %v646 = vld [vmem:[#allocation9 + $0x24] sm:$0xf]
        %v647 = vld [vmem:[#allocation9 + $0x28] sm:$0xf]
        %v648 = vld [vmem:[#allocation9 + $0x2c] sm:$0xf]
        %v649 = vld [vmem:[#allocation9 + $0x30] sm:$0xf]
        %v650 = vld [vmem:[#allocation9 + $0x34] sm:$0xf]
        %v651 = vld [vmem:[#allocation9 + $0x38] sm:$0xf]
        %v652 = vld [vmem:[#allocation9 + $0x3c] sm:$0xf]
        %v653 = vld [vmem:[#allocation3] sm:$0xf]
        %v654 = vld [vmem:[#allocation3 + $0x4] sm:$0xf]
        %v655 = vld [vmem:[#allocation3 + $0x8] sm:$0x1]
        %s656 = scalar_lea.vmem [#allocation9], 64
        %v657 = vld [vmem:[%s656] sm:$0xf]
        %v658 = vld [vmem:[%s656 + $0x4] sm:$0xf]
        %v659 = vld [vmem:[%s656 + $0x8] sm:$0xf]
        %v660 = vld [vmem:[%s656 + $0xc] sm:$0xf]
        %v661 = vld [vmem:[%s656 + $0x10] sm:$0xf]
        %v662 = vld [vmem:[%s656 + $0x14] sm:$0xf]
        %v663 = vld [vmem:[%s656 + $0x18] sm:$0xf]
        %v664 = vld [vmem:[%s656 + $0x1c] sm:$0xf]
        %v665 = vld [vmem:[%s656 + $0x20] sm:$0xf]
        %v666 = vld [vmem:[%s656 + $0x24] sm:$0xf]
        %v667 = vld [vmem:[%s656 + $0x28] sm:$0xf]
        %v668 = vld [vmem:[%s656 + $0x2c] sm:$0xf]
        %v669 = vld [vmem:[%s656 + $0x30] sm:$0xf]
        %v670 = vld [vmem:[%s656 + $0x34] sm:$0xf]
        %v671 = vld [vmem:[%s656 + $0x38] sm:$0xf]
        %v672 = vld [vmem:[%s656 + $0x3c] sm:$0xf]
        %v676 = vunpack.c.l.b16 %v653
        %v677 = vunpack.c.l.b16 %v654
        %v678 = vunpack.c.l.b16 %v655
        %v679 = vpack.c.b16 %v677, %v676
        %v680 = vpack.c.b16 %v678, %v678
        %v682 = vshrl.u32 %v679, 16
        %v684 = vshll.u32 %v679, 16
        %v686 = vrot.slane %v684, 1
        %v687 = vor.u32 %v682, %v686
        %v689 = vshll.u32 %v680, 16
        %v691 = vrot.slane %v689, 1
        %v692 = vsel %vm345, %v687, %v691
        %v710 = vunpack.c.l.b16 %v657
        %v711 = vunpack.c.l.b16 %v658
        %v712 = vunpack.c.l.b16 %v659
        %v713 = vunpack.c.l.b16 %v660
        %v714 = vunpack.c.l.b16 %v661
        %v715 = vunpack.c.l.b16 %v662
        %v716 = vunpack.c.l.b16 %v663
        %v717 = vunpack.c.l.b16 %v664
        %v718 = vunpack.c.l.b16 %v665
        %v719 = vunpack.c.l.b16 %v666
        %v720 = vunpack.c.l.b16 %v667
        %v721 = vunpack.c.l.b16 %v668
        %v722 = vunpack.c.l.b16 %v669
        %v723 = vunpack.c.l.b16 %v670
        %v724 = vunpack.c.l.b16 %v671
        %v725 = vunpack.c.l.b16 %v672
        %v726 = vpack.c.b16 %v711, %v710
        %v727 = vpack.c.b16 %v713, %v712
        %v728 = vpack.c.b16 %v715, %v714
        %v729 = vpack.c.b16 %v717, %v716
        %v730 = vpack.c.b16 %v719, %v718
        %v731 = vpack.c.b16 %v721, %v720
        %v732 = vpack.c.b16 %v723, %v722
        %v733 = vpack.c.b16 %v725, %v724
        %742 = vmatprep.subr.bf16.mxu0 0
        %743 = vmatpush1.bf16.msra.mxu0 %v726
        %744 = vmatprep.subr.bf16.mxu0 0
        %745 = vmatpush1.bf16.msra.mxu0 %v727
        %746 = vmatprep.subr.bf16.mxu0 0
        %747 = vmatpush1.bf16.msra.mxu0 %v728
        %748 = vmatprep.subr.bf16.mxu0 0
        %749 = vmatpush1.bf16.msra.mxu0 %v729
        %750 = vmatprep.subr.bf16.mxu0 0
        %751 = vmatpush1.bf16.msra.mxu0 %v730
        %752 = vmatprep.subr.bf16.mxu0 0
        %753 = vmatpush1.bf16.msra.mxu0 %v731
        %754 = vmatprep.subr.bf16.mxu0 0
        %755 = vmatpush1.bf16.msra.mxu0 %v732
        %756 = vmatprep.subr.bf16.mxu0 0
        %757 = vmatpush1.bf16.msra.mxu0 %v733
        %758 = vmatprep.subr.bf16.mxu0 0
        %759 = vmatpush1.bf16.msra.mxu0 0
        %760 = vmatprep.subr.bf16.mxu0 0
        %761 = vmatpush1.bf16.msra.mxu0 0
        %762 = vmatprep.subr.bf16.mxu0 0
        %763 = vmatpush1.bf16.msra.mxu0 0
        %764 = vmatprep.subr.bf16.mxu0 0
        %765 = vmatpush1.bf16.msra.mxu0 0
        %766 = vmatprep.subr.bf16.mxu0 0
        %767 = vmatpush1.bf16.msra.mxu0 0
        %768 = vmatprep.subr.bf16.mxu0 0
        %769 = vmatpush1.bf16.msra.mxu0 0
        %770 = vmatprep.subr.bf16.mxu0 0
        %771 = vmatpush1.bf16.msra.mxu0 0
        %772 = vmatprep.subr.bf16.mxu0 0
        %773 = vmatpush1.bf16.msra.mxu0 0
        %774 = vmatprep.mubr.bf16.mxu0 0
        %775 = vmatmul.mubr.bf16.gmra.mrb[0].mxu0 %v692
        %v776 = vpop.f32.mrb[0].mxu0
        %v777 = vadd.f32 0.0, %v776
        %v778 = vpop.f32.mrb[0].mxu0
        %v779 = vpop.f32.mrb[0].mxu0
        %v780 = vadd.f32 0.0, %v779
        %v781 = vpop.f32.mrb[0].mxu0
        %782 = vdwg.mxu0
        %v785 = vunpack.c.l.b16 %v635
        %v786 = vunpack.c.l.b16 %v636
        %v787 = vpack.c.b16 %v786, %v785
        %v805 = vunpack.c.l.b16 %v637
        %v806 = vunpack.c.l.b16 %v638
        %v807 = vunpack.c.l.b16 %v639
        %v808 = vunpack.c.l.b16 %v640
        %v809 = vunpack.c.l.b16 %v641
        %v810 = vunpack.c.l.b16 %v642
        %v811 = vunpack.c.l.b16 %v643
        %v812 = vunpack.c.l.b16 %v644
        %v813 = vunpack.c.l.b16 %v645
        %v814 = vunpack.c.l.b16 %v646
        %v815 = vunpack.c.l.b16 %v647
        %v816 = vunpack.c.l.b16 %v648
        %v817 = vunpack.c.l.b16 %v649
        %v818 = vunpack.c.l.b16 %v650
        %v819 = vunpack.c.l.b16 %v651
        %v820 = vunpack.c.l.b16 %v652
        %v821 = vpack.c.b16 %v806, %v805
        %v822 = vpack.c.b16 %v808, %v807
        %v823 = vpack.c.b16 %v810, %v809
        %v824 = vpack.c.b16 %v812, %v811
        %v825 = vpack.c.b16 %v814, %v813
        %v826 = vpack.c.b16 %v816, %v815
        %v827 = vpack.c.b16 %v818, %v817
        %v828 = vpack.c.b16 %v820, %v819
        %837 = vmatprep.subr.bf16.mxu0 0
        %838 = vmatpush1.bf16.msra.mxu0 %v821
        %839 = vmatprep.subr.bf16.mxu0 0
        %840 = vmatpush1.bf16.msra.mxu0 %v822
        %841 = vmatprep.subr.bf16.mxu0 0
        %842 = vmatpush1.bf16.msra.mxu0 %v823
        %843 = vmatprep.subr.bf16.mxu0 0
        %844 = vmatpush1.bf16.msra.mxu0 %v824
        %845 = vmatprep.subr.bf16.mxu0 0
        %846 = vmatpush1.bf16.msra.mxu0 %v825
        %847 = vmatprep.subr.bf16.mxu0 0
        %848 = vmatpush1.bf16.msra.mxu0 %v826
        %849 = vmatprep.subr.bf16.mxu0 0
        %850 = vmatpush1.bf16.msra.mxu0 %v827
        %851 = vmatprep.subr.bf16.mxu0 0
        %852 = vmatpush1.bf16.msra.mxu0 %v828
        %853 = vmatprep.subr.bf16.mxu0 0
        %854 = vmatpush1.bf16.msra.mxu0 0
        %855 = vmatprep.subr.bf16.mxu0 0
        %856 = vmatpush1.bf16.msra.mxu0 0
        %857 = vmatprep.subr.bf16.mxu0 0
        %858 = vmatpush1.bf16.msra.mxu0 0
        %859 = vmatprep.subr.bf16.mxu0 0
        %860 = vmatpush1.bf16.msra.mxu0 0
        %861 = vmatprep.subr.bf16.mxu0 0
        %862 = vmatpush1.bf16.msra.mxu0 0
        %863 = vmatprep.subr.bf16.mxu0 0
        %864 = vmatpush1.bf16.msra.mxu0 0
        %865 = vmatprep.subr.bf16.mxu0 0
        %866 = vmatpush1.bf16.msra.mxu0 0
        %867 = vmatprep.subr.bf16.mxu0 0
        %868 = vmatpush1.bf16.msra.mxu0 0
        %869 = vmatprep.mubr.bf16.mxu0 0
        %870 = vmatmul.mubr.bf16.gmra.mrb[0].mxu0 %v787
        %v871 = vpop.f32.mrb[0].mxu0
        %v872 = vadd.f32 %v777, %v871
        %v873 = vpop.f32.mrb[0].mxu0
        %v874 = vpop.f32.mrb[0].mxu0
        %v875 = vadd.f32 %v780, %v874
        %v876 = vpop.f32.mrb[0].mxu0
        %877 = vdwg.mxu0
        %v878 = vld [vmem:[#allocation3] sm:$0xe]
        %s879 = scalar_lea.vmem [#allocation9], 128
        %v880 = vld [vmem:[%s879] sm:$0xf]
        %v881 = vld [vmem:[%s879 + $0x4] sm:$0xf]
        %v882 = vld [vmem:[%s879 + $0x8] sm:$0xf]
        %v883 = vld [vmem:[%s879 + $0xc] sm:$0xf]
        %v884 = vld [vmem:[%s879 + $0x10] sm:$0xf]
        %v885 = vld [vmem:[%s879 + $0x14] sm:$0xf]
        %v886 = vld [vmem:[%s879 + $0x18] sm:$0xf]
        %v887 = vld [vmem:[%s879 + $0x1c] sm:$0xf]
        %v888 = vld [vmem:[%s879 + $0x20] sm:$0xf]
        %v889 = vld [vmem:[%s879 + $0x24] sm:$0xf]
        %v890 = vld [vmem:[%s879 + $0x28] sm:$0xf]
        %v891 = vld [vmem:[%s879 + $0x2c] sm:$0xf]
        %v892 = vld [vmem:[%s879 + $0x30] sm:$0xf]
        %v893 = vld [vmem:[%s879 + $0x34] sm:$0xf]
        %v894 = vld [vmem:[%s879 + $0x38] sm:$0xf]
        %v895 = vld [vmem:[%s879 + $0x3c] sm:$0xf]
        %v897 = vunpack.c.l.b16 %v878
        %v898 = vpack.c.b16 %v677, %v897
        %v899 = vrot.slane %v898, 1
        %v900 = vrot.slane %v680, 1
        %v901 = vsel %vm507, %v899, %v900
        %v919 = vunpack.c.l.b16 %v880
        %v920 = vunpack.c.l.b16 %v881
        %v921 = vunpack.c.l.b16 %v882
        %v922 = vunpack.c.l.b16 %v883
        %v923 = vunpack.c.l.b16 %v884
        %v924 = vunpack.c.l.b16 %v885
        %v925 = vunpack.c.l.b16 %v886
        %v926 = vunpack.c.l.b16 %v887
        %v927 = vunpack.c.l.b16 %v888
        %v928 = vunpack.c.l.b16 %v889
        %v929 = vunpack.c.l.b16 %v890
        %v930 = vunpack.c.l.b16 %v891
        %v931 = vunpack.c.l.b16 %v892
        %v932 = vunpack.c.l.b16 %v893
        %v933 = vunpack.c.l.b16 %v894
        %v934 = vunpack.c.l.b16 %v895
        %v935 = vpack.c.b16 %v920, %v919
        %v936 = vpack.c.b16 %v922, %v921
        %v937 = vpack.c.b16 %v924, %v923
        %v938 = vpack.c.b16 %v926, %v925
        %v939 = vpack.c.b16 %v928, %v927
        %v940 = vpack.c.b16 %v930, %v929
        %v941 = vpack.c.b16 %v932, %v931
        %v942 = vpack.c.b16 %v934, %v933
        %951 = vmatprep.subr.bf16.mxu0 0
        %952 = vmatpush1.bf16.msra.mxu0 %v935
        %953 = vmatprep.subr.bf16.mxu0 0
        %954 = vmatpush1.bf16.msra.mxu0 %v936
        %955 = vmatprep.subr.bf16.mxu0 0
        %956 = vmatpush1.bf16.msra.mxu0 %v937
        %957 = vmatprep.subr.bf16.mxu0 0
        %958 = vmatpush1.bf16.msra.mxu0 %v938
        %959 = vmatprep.subr.bf16.mxu0 0
        %960 = vmatpush1.bf16.msra.mxu0 %v939
        %961 = vmatprep.subr.bf16.mxu0 0
        %962 = vmatpush1.bf16.msra.mxu0 %v940
        %963 = vmatprep.subr.bf16.mxu0 0
        %964 = vmatpush1.bf16.msra.mxu0 %v941
        %965 = vmatprep.subr.bf16.mxu0 0
        %966 = vmatpush1.bf16.msra.mxu0 %v942
        %967 = vmatprep.subr.bf16.mxu0 0
        %968 = vmatpush1.bf16.msra.mxu0 0
        %969 = vmatprep.subr.bf16.mxu0 0
        %970 = vmatpush1.bf16.msra.mxu0 0
        %971 = vmatprep.subr.bf16.mxu0 0
        %972 = vmatpush1.bf16.msra.mxu0 0
        %973 = vmatprep.subr.bf16.mxu0 0
        %974 = vmatpush1.bf16.msra.mxu0 0
        %975 = vmatprep.subr.bf16.mxu0 0
        %976 = vmatpush1.bf16.msra.mxu0 0
        %977 = vmatprep.subr.bf16.mxu0 0
        %978 = vmatpush1.bf16.msra.mxu0 0
        %979 = vmatprep.subr.bf16.mxu0 0
        %980 = vmatpush1.bf16.msra.mxu0 0
        %981 = vmatprep.subr.bf16.mxu0 0
        %982 = vmatpush1.bf16.msra.mxu0 0
        %983 = vmatprep.mubr.bf16.mxu0 0
        %984 = vmatmul.mubr.bf16.gmra.mrb[0].mxu0 %v901
        %v985 = vpop.f32.mrb[0].mxu0
        %v986 = vadd.f32 0.0, %v985
        %v987 = vpop.f32.mrb[0].mxu0
        %v988 = vpop.f32.mrb[0].mxu0
        %v989 = vadd.f32 0.0, %v988
        %v990 = vpop.f32.mrb[0].mxu0
        %991 = vdwg.mxu0
        %v992 = vadd.f32 %v872, %v986
        %v993 = vadd.f32 %v875, %v989
        %v994 = vld [vmem:[%s4] sm:$0x1]
        %v996 = vlaneseq
        %v997 = vshrl.u32 %v996, 7
        %v998 = vsub.s32 0, %v997
        %v999 = vrot.slane %v994, %v998
        %v1001 = vadd.f32 %v992, %v999
        %v1002 = vadd.f32 %v993, %v999
        %v1003 = vmax.f32 %v1001, 0.0
        %v1004 = vmax.f32 %v1002, 0.0
        %1005 = vst [vmem:[%s271] sm:$0xff] %v1003
        %1006 = vst [vmem:[%s271 + $0x8] sm:$0xff] %v1004
        %s1007 = sand.u32 %s141, 1
        %s1008 = scalar_lea.sflag [#allocation6], %s1007
        %s1009 = sand.u32 %s141, 1
        %s1010 = smul.addr %s1009, 16
        %s1011 = scalar_lea.vmem [#allocation10], %s1010
        // Predicated region
        $region53: #{tpu_custom_call.1} parent=39 // pred_check
          %p1012 = pneg %p151
        $region54: #{tpu_custom_call.1} parent=39 // pred_check_branch
          %1014 = sbr.rel (%p1012) target = $region56
        $region55: #{tpu_custom_call.1} parent=39 // pred_region
          %s1016 = ssub.s32 256, 256
          %1017 = vsyncadd %s1008, %s1016
          %s1018 = smul.addr %s23, 2
          %s1019 = smul.addr %s1018, 128
          %s1020 = scalar_lea.hbm %s5, %s1019
          %s1021 = sshll.u32 %s1011, 4
          %s1022 = int_to_ptr.vmem [resolvable:$true] %s1021
          %1027 = dma.vmem_to_hbm [thread:$0]  %s1022, 256, %s1020, %s1008, 128, 128, 8
        $region56: #{tpu_custom_call.1} parent=39 // pred_fallthru
          _
      $region40: #{tpu_custom_call.1} parent=5 // pred_fallthru
        _
      %p1028 = scmp.le.s32.totalorder 2, %s18
      // Predicated region
      $region57: #{tpu_custom_call.1} parent=5 // pred_check
        %p1029 = pneg %p1028
      $region58: #{tpu_custom_call.1} parent=5 // pred_check_branch
        %1031 = sbr.rel (%p1029) target = $region60
      $region59: #{tpu_custom_call.1} parent=5 // pred_region
        %s1032 = ssub.s32 %s18, 2
        // Predicated region
        $region61: #{tpu_custom_call.1} parent=59 // pred_check
          %p1033 = pneg %p157
        $region62: #{tpu_custom_call.1} parent=59 // pred_check_branch
          %1035 = sbr.rel (%p1033) target = $region64
        $region63: #{tpu_custom_call.1} parent=59 // pred_region
          %s1036 = sand.u32 %s142, 1
          %s1037 = scalar_lea.sflag [#allocation6], %s1036
          %s1038 = sand.u32 %s142, 1
          %s1039 = smul.addr %s1038, 16
          %s1040 = scalar_lea.vmem [#allocation10], %s1039
          %1041 = dma.done %s1037, 256
        $region64: #{tpu_custom_call.1} parent=59 // pred_fallthru
          _
      $region60: #{tpu_custom_call.1} parent=5 // pred_fallthru
        _
    $region6: #{tpu_custom_call.1} parent=1 // loop_footer
      %s22 = sadd.s32 1, %s18
    $region7: #{tpu_custom_call.1} parent=1 // loop_footer_branch
      %17 = sbr.rel target = $region3
    $region8: #{tpu_custom_call.1} parent=1 // loop_exit
      _
    %1042 = vsyncpa [#allocation5], 1
    %s1043 = scalar_lea.sflag [#allocation5], 1
    %1044 = vsyncpa %s1043, 1
    %1045 = vsyncpa [#allocation8], 1
    %1046 = vsyncpa [#allocation6], 1
    %s1047 = scalar_lea.sflag [#allocation6], 1
    %1048 = vsyncpa %s1047, 1

</llo_original>
